<compile_context>
chip_gen: v7x
topology: tpu7x:2x2x1
jax: 0.10.0
libtpu: 0.0.40
codegen_flags: <defaults>
</compile_context>

<pallas_src>
import functools

import numpy as np
import jax
import jax.numpy as jnp
from jax.experimental import pallas as pl
from jax.experimental.pallas import tpu as pltpu

MID_DIM = 16
HIDDEN = 256
MLP_HIDDEN = 128


# ---------------------------------------------------------------------------
# Kernel
# ---------------------------------------------------------------------------
def _qnet_kernel(metric, sdim, x_ref, w13_ref, w24_ref, b24_ref, *rest):
    """x = [obs | goal | 1]; fused block-diagonal trunk + metric head, all in VMEM."""
    cdt = w13_ref.dtype                      # matmul-operand dtype (bf16 prod / f32 check)
    x = x_ref[...].astype(cdt)

    # Fused trunk: layer-1 bias is folded into w13 (ones column in x).
    h1 = jnp.maximum(
        jnp.dot(x, w13_ref[...], preferred_element_type=jnp.float32), 0.0)
    sg = jnp.maximum(
        jnp.dot(h1.astype(cdt), w24_ref[...], preferred_element_type=jnp.float32)
        + b24_ref[...], 0.0)
    # sg = [s (sdim lanes) | g (mid_dim lanes)], contiguous, f32.

    if metric == "MLP":
        wm1_ref, bm1_ref, wm2_ref, bm2_ref, out_ref = rest
        # sg already has the torch.cat([s, g], dim=1) layout -> no concat needed.
        h = jnp.maximum(
            jnp.dot(sg.astype(cdt), wm1_ref[...], preferred_element_type=jnp.float32)
            + bm1_ref[...], 0.0)
        out_ref[...] = (
            jnp.dot(h.astype(cdt), wm2_ref[...], preferred_element_type=jnp.float32)
            + bm2_ref[...])
    elif metric == "dot":
        g_sel_ref, r_ref, out_ref = rest
        s = sg[:, :sdim]                                   # static lane slice (free)
        gt = jnp.dot(sg.astype(cdt), g_sel_ref[...],
                     preferred_element_type=jnp.float32)   # tile(g)
        out_ref[...] = -jnp.dot((s * gt).astype(cdt), r_ref[...],
                                preferred_element_type=jnp.float32)
    elif metric == "L1":
        m1_ref, r_ref, out_ref = rest
        diff = jnp.dot(sg.astype(cdt), m1_ref[...],
                       preferred_element_type=jnp.float32)  # s - tile(g)
        out_ref[...] = jnp.dot(jnp.abs(diff).astype(cdt), r_ref[...],
                               preferred_element_type=jnp.float32)
    elif metric == "L2":
        m1_ref, r_ref, out_ref = rest
        diff = jnp.dot(sg.astype(cdt), m1_ref[...],
                       preferred_element_type=jnp.float32)  # s - tile(g)
        ssq = jnp.dot((diff * diff).astype(cdt), r_ref[...],
                      preferred_element_type=jnp.float32)
        out_ref[...] = jnp.sqrt(ssq + 1e-14)
    else:
        raise NotImplementedError(metric)


# ---------------------------------------------------------------------------
# Host-side parameter packing (fused block-diagonal trunk + metric matrices)
# ---------------------------------------------------------------------------
def pack_params(params, *, metric, action_n, mid_dim=MID_DIM,
                param_dtype=jnp.bfloat16):
    obs_dim = params["w1"].shape[0]
    goal_dim = params["w3"].shape[0]
    sdim = mid_dim * action_n

    # w13 = blockdiag(w1, w3) with an extra bias row (layer-1 bias folded in).
    w13 = np.zeros((obs_dim + goal_dim + 1, 2 * HIDDEN), np.float32)
    w13[:obs_dim, :HIDDEN] = np.asarray(params["w1"])
    w13[obs_dim:obs_dim + goal_dim, HIDDEN:] = np.asarray(params["w3"])
    w13[-1, :HIDDEN] = np.asarray(params["b1"])[0]
    w13[-1, HIDDEN:] = np.asarray(params["b3"])[0]

    w24 = np.zeros((2 * HIDDEN, sdim + mid_dim), np.float32)
    w24[:HIDDEN, :sdim] = np.asarray(params["w2"])
    w24[HIDDEN:, sdim:] = np.asarray(params["w4"])
    b24 = np.concatenate([np.asarray(params["b2"]), np.asarray(params["b4"])], 1)

    packed = {
        "w13": jnp.asarray(w13, param_dtype),
        "w24": jnp.asarray(w24, param_dtype),
        "b24": jnp.asarray(b24, jnp.float32),   # bias add stays f32 (v5e VPU path)
    }

    if metric == "MLP":
        packed["wm1"] = jnp.asarray(params["wm1"], param_dtype)
        packed["bm1"] = jnp.asarray(params["bm1"], jnp.float32)
        packed["wm2"] = jnp.asarray(params["wm2"], param_dtype)
        packed["bm2"] = jnp.asarray(params["bm2"], jnp.float32)
    else:
        # tile_g maps the g lanes of sg onto action_n repeated copies.
        tile_g = np.tile(np.eye(mid_dim, dtype=np.float32), (1, action_n))   # (mid, sdim)
        # Block-diagonal ones: column a sums lanes a*mid .. (a+1)*mid-1 (0/1 exact in bf16).
        r_mat = np.kron(np.eye(action_n, dtype=np.float32),
                        np.ones((mid_dim, 1), dtype=np.float32))              # (sdim, an)
        packed["r"] = jnp.asarray(r_mat, param_dtype)
        if metric == "dot":
            packed["g_sel"] = jnp.asarray(
                np.concatenate([np.zeros((sdim, sdim), np.float32), tile_g], 0),
                param_dtype)                                                  # sg -> tile(g)
        else:  # L1 / L2
            eye_s = np.eye(sdim, dtype=np.float32)
            packed["m1"] = jnp.asarray(
                np.concatenate([eye_s, -tile_g], 0), param_dtype)             # sg -> s - tile(g)
    return packed


# ---------------------------------------------------------------------------
# Wrapper
# ---------------------------------------------------------------------------
def qnet_forward(obs, goal, packed, *, metric, action_n, mid_dim=MID_DIM,
                 block_batch=256):
    batch = obs.shape[0]
    sdim = mid_dim * action_n
    out_dim = sdim + mid_dim

    # Wrapper-side concat (plain XLA op); ones column carries the folded layer-1 bias.
    x = jnp.concatenate(
        [obs.astype(jnp.float32), goal.astype(jnp.float32),
         jnp.ones((batch, 1), jnp.float32)], axis=1)
    in_feat = x.shape[1]

    # Batch tile: full batch if small, otherwise a sublane-aligned tile.
    if batch <= block_batch:
        tb = batch
    else:
        tb = max(8, (block_batch // 8) * 8)
    grid = (pl.cdiv(batch, tb),)

    weight_names = ["w13", "w24", "b24"]
    if metric == "MLP":
        weight_names += ["wm1", "bm1", "wm2", "bm2"]
    elif metric == "dot":
        weight_names += ["g_sel", "r"]
    else:
        weight_names += ["m1", "r"]
    weights = [packed[n] for n in weight_names]

    in_specs = [pl.BlockSpec((tb, in_feat), lambda i: (i, 0))]
    # Weights: same (whole-array) block for every grid step -> VMEM-resident.
    in_specs += [pl.BlockSpec(w.shape, lambda i: (0, 0)) for w in weights]
    out_specs = pl.BlockSpec((tb, action_n), lambda i: (i, 0))

    # Advisory cost estimate (kernel is overhead/DMA-bound at small batch).
    mm = batch * in_feat * (2 * HIDDEN) + batch * (2 * HIDDEN) * out_dim
    if metric == "MLP":
        mm += batch * out_dim * MLP_HIDDEN + batch * MLP_HIDDEN * action_n
    else:
        mm += batch * out_dim * sdim + batch * sdim * action_n
    cost = pl.CostEstimate(
        flops=int(2 * mm),
        transcendentals=int(batch * action_n) if metric == "L2" else 0,
        bytes_accessed=int(x.size * x.dtype.itemsize
                           + sum(int(w.size) * w.dtype.itemsize for w in weights)
                           + batch * action_n * 4),
    )

    # TODO(synk): cross-call weight prefetch / VMEM residency across RL steps
    # (P10-style semaphore future) would remove the per-call weight DMA entirely.
    kernel = functools.partial(_qnet_kernel, metric, sdim)
    return pl.pallas_call(
        kernel,
        out_shape=jax.ShapeDtypeStruct((batch, action_n), jnp.float32),
        grid=grid,
        in_specs=in_specs,
        out_specs=out_specs,
        compiler_params=pltpu.CompilerParams(dimension_semantics=("parallel",)),
        cost_estimate=cost,
    )(x, *weights)


# ---------------------------------------------------------------------------
# Synthetic init + pure-JAX reference (mirrors the PyTorch forward)
# ---------------------------------------------------------------------------
def init_params(key, obs_dim, goal_dim, action_n, metric, mid_dim=MID_DIM):
    """Deterministic synthetic weights; weights stored as [in, out], biases as [1, out]."""
    ks = jax.random.split(key, 12)

    def lin(kw, kb, fan_in, fan_out):
        bound = 1.0 / jnp.sqrt(fan_in)
        w = jax.random.uniform(kw, (fan_in, fan_out), jnp.float32, -bound, bound)
        b = jax.random.uniform(kb, (1, fan_out), jnp.float32, -bound, bound)
        return w, b

    p = {}
    p["w1"], p["b1"] = lin(ks[0], ks[1], obs_dim, HIDDEN)
    p["w2"], p["b2"] = lin(ks[2], ks[3], HIDDEN, mid_dim * action_n)
    p["w3"], p["b3"] = lin(ks[4], ks[5], goal_dim, HIDDEN)
    p["w4"], p["b4"] = lin(ks[6], ks[7], HIDDEN, mid_dim)
    if metric == "MLP":
        p["wm1"], p["bm1"] = lin(ks[8], ks[9], mid_dim * (action_n + 1), MLP_HIDDEN)
        p["wm2"], p["bm2"] = lin(ks[10], ks[11], MLP_HIDDEN, action_n)
    return p


def qnet_reference(obs, goal, params, *, metric, action_n, mid_dim=MID_DIM):
    s = jax.nn.relu(obs @ params["w1"] + params["b1"])
    s = jax.nn.relu(s @ params["w2"] + params["b2"])
    g = jax.nn.relu(goal @ params["w3"] + params["b3"])
    g = jax.nn.relu(g @ params["w4"] + params["b4"])
    s3 = s.reshape(s.shape[0], action_n, mid_dim)
    if metric == "L1":
        return jnp.sum(jnp.abs(s3 - g[:, None, :]), axis=2)
    if metric == "dot":
        return -jnp.sum(s3 * g[:, None, :], axis=2)
    if metric == "L2":
        return (jnp.sum(jnp.abs(s3 - g[:, None, :]) ** 2, axis=2) + 1e-14) ** 0.5
    if metric == "MLP":
        x = jnp.concatenate([s, g], axis=1)
        h = jax.nn.relu(x @ params["wm1"] + params["bm1"])
        return h @ params["wm2"] + params["bm2"]
    raise NotImplementedError(metric)


if __name__ == "__main__":
    key = jax.random.PRNGKey(0)
    k_obs, k_goal, k_params, k_obs2, k_goal2 = jax.random.split(key, 5)

    obs_dim, goal_dim, action_n = 24, 8, 4

    # Small batch (launch-overhead regime, gridless) ...
    obs_s = jax.random.normal(k_obs, (2, obs_dim), jnp.float32)
    goal_s = jax.random.normal(k_goal, (2, goal_dim), jnp.float32)
    # ... and a slightly larger batch to exercise the parallel batch grid (3 x 16 rows).
    obs_l = jax.random.normal(k_obs2, (48, obs_dim), jnp.float32)
    goal_l = jax.random.normal(k_goal2, (48, goal_dim), jnp.float32)

    for metric in ("L2", "L1", "dot", "MLP"):
        params = init_params(k_params, obs_dim, goal_dim, action_n, metric)

        # f32 weights: tight correctness check.
        packed_f32 = pack_params(params, metric=metric, action_n=action_n,
                                 param_dtype=jnp.float32)
        out = jax.block_until_ready(
            qnet_forward(obs_s, goal_s, packed_f32, metric=metric, action_n=action_n))
        ref = qnet_reference(obs_s, goal_s, params, metric=metric, action_n=action_n)
        assert out.shape == (2, action_n)
        assert jnp.allclose(out, ref, atol=2e-4, rtol=2e-4), (metric, "f32")

        # bf16 weights (production path): half the weight DMA, native MXU bf16 rate,
        # gridded over the batch with parallel semantics.
        packed_bf16 = pack_params(params, metric=metric, action_n=action_n,
                                  param_dtype=jnp.bfloat16)
        out = jax.block_until_ready(
            qnet_forward(obs_l, goal_l, packed_bf16, metric=metric, action_n=action_n,
                         block_batch=16))
        ref = qnet_reference(obs_l, goal_l, params, metric=metric, action_n=action_n)
        assert out.shape == (48, action_n)
        assert jnp.allclose(out, ref, atol=5e-2, rtol=5e-2), (metric, "bf16")

    print("KERNEL_OK")
</pallas_src>

<mosaic_0001>
module attributes {stable_mosaic.version = 11 : i64} {
  func.func @_qnet_kernel(%arg0: i32, %arg1: memref<2x33xf32, #tpu.memory_space<vmem>>, %arg2: memref<33x512xf32, #tpu.memory_space<vmem>>, %arg3: memref<512x80xf32, #tpu.memory_space<vmem>>, %arg4: memref<1x80xf32, #tpu.memory_space<vmem>>, %arg5: memref<80x64xf32, #tpu.memory_space<vmem>>, %arg6: memref<64x4xf32, #tpu.memory_space<vmem>>, %arg7: memref<2x4xf32, #tpu.memory_space<vmem>>) attributes {dimension_semantics = [#tpu.dimension_semantics<parallel>], iteration_bounds = array<i64: 1>, scalar_prefetch = 0 : i64, scratch_operands = 0 : i64, tpu.core_type = #tpu.core_type<tc>, window_params = [{transform_indices = @transform_0, window_bounds = array<i64: 2, 33>}, {pipeline_mode = #tpu.pipeline_mode<synchronous>, transform_indices = @transform_1, window_bounds = array<i64: 33, 512>}, {pipeline_mode = #tpu.pipeline_mode<synchronous>, transform_indices = @transform_2, window_bounds = array<i64: 512, 80>}, {pipeline_mode = #tpu.pipeline_mode<synchronous>, transform_indices = @transform_3, window_bounds = array<i64: 1, 80>}, {pipeline_mode = #tpu.pipeline_mode<synchronous>, transform_indices = @transform_4, window_bounds = array<i64: 80, 64>}, {pipeline_mode = #tpu.pipeline_mode<synchronous>, transform_indices = @transform_5, window_bounds = array<i64: 64, 4>}, {transform_indices = @transform_6, window_bounds = array<i64: 2, 4>}]} {
    %c0 = arith.constant 0 : index
    %c0_0 = arith.constant 0 : index
    %0 = vector.load %arg1[%c0, %c0_0] : memref<2x33xf32, #tpu.memory_space<vmem>>, vector<2x33xf32>
    %c0_1 = arith.constant 0 : index
    %c0_2 = arith.constant 0 : index
    %1 = vector.load %arg2[%c0_1, %c0_2] : memref<33x512xf32, #tpu.memory_space<vmem>>, vector<33x512xf32>
    %cst = arith.constant dense<0.000000e+00> : vector<2x512xf32>
    %2 = tpu.matmul %0, %1, %cst {dimension_numbers = #tpu.dot_dimension_numbers<[1], [0], [0], [1], [0, 0, 1, 1], [], []>} : vector<2x33xf32>, vector<33x512xf32>, vector<2x512xf32> -> vector<2x512xf32>
    %cst_3 = arith.constant 0.000000e+00 : f32
    %3 = vector.broadcast %cst_3 : f32 to vector<2x512xf32>
    %4 = arith.maximumf %2, %3 : vector<2x512xf32>
    %c0_4 = arith.constant 0 : index
    %c0_5 = arith.constant 0 : index
    %5 = vector.load %arg3[%c0_4, %c0_5] : memref<512x80xf32, #tpu.memory_space<vmem>>, vector<512x80xf32>
    %cst_6 = arith.constant dense<0.000000e+00> : vector<2x80xf32>
    %6 = tpu.matmul %4, %5, %cst_6 {dimension_numbers = #tpu.dot_dimension_numbers<[1], [0], [0], [1], [0, 0, 1, 1], [], []>} : vector<2x512xf32>, vector<512x80xf32>, vector<2x80xf32> -> vector<2x80xf32>
    %c0_7 = arith.constant 0 : index
    %c0_8 = arith.constant 0 : index
    %7 = vector.load %arg4[%c0_7, %c0_8] : memref<1x80xf32, #tpu.memory_space<vmem>>, vector<1x80xf32>
    %8 = vector.broadcast %7 : vector<1x80xf32> to vector<2x80xf32>
    %9 = arith.addf %6, %8 : vector<2x80xf32>
    %cst_9 = arith.constant 0.000000e+00 : f32
    %10 = vector.broadcast %cst_9 : f32 to vector<2x80xf32>
    %11 = arith.maximumf %9, %10 : vector<2x80xf32>
    %c0_10 = arith.constant 0 : index
    %c0_11 = arith.constant 0 : index
    %12 = vector.load %arg5[%c0_10, %c0_11] : memref<80x64xf32, #tpu.memory_space<vmem>>, vector<80x64xf32>
    %cst_12 = arith.constant dense<0.000000e+00> : vector<2x64xf32>
    %13 = tpu.matmul %11, %12, %cst_12 {dimension_numbers = #tpu.dot_dimension_numbers<[1], [0], [0], [1], [0, 0, 1, 1], [], []>} : vector<2x80xf32>, vector<80x64xf32>, vector<2x64xf32> -> vector<2x64xf32>
    %14 = arith.mulf %13, %13 : vector<2x64xf32>
    %c0_13 = arith.constant 0 : index
    %c0_14 = arith.constant 0 : index
    %15 = vector.load %arg6[%c0_13, %c0_14] : memref<64x4xf32, #tpu.memory_space<vmem>>, vector<64x4xf32>
    %cst_15 = arith.constant dense<0.000000e+00> : vector<2x4xf32>
    %16 = tpu.matmul %14, %15, %cst_15 {dimension_numbers = #tpu.dot_dimension_numbers<[1], [0], [0], [1], [0, 0, 1, 1], [], []>} : vector<2x64xf32>, vector<64x4xf32>, vector<2x4xf32> -> vector<2x4xf32>
    %cst_16 = arith.constant 9.99999982E-15 : f32
    %17 = vector.broadcast %cst_16 : f32 to vector<2x4xf32>
    %18 = arith.addf %16, %17 : vector<2x4xf32>
    %19 = math.sqrt %18 : vector<2x4xf32>
    %c0_17 = arith.constant 0 : index
    %c0_18 = arith.constant 0 : index
    %20 = vector.load %arg7[%c0_17, %c0_18] : memref<2x4xf32, #tpu.memory_space<vmem>>, vector<2x4xf32>
    tpu.vector_store %arg7[%c0_17, %c0_18], %19 {strides = array<i32>} : memref<2x4xf32, #tpu.memory_space<vmem>>, vector<2x4xf32>,
    return
  }
  func.func @transform_0(%arg0: i32) -> (i32, i32) {
    %c0_i32 = arith.constant 0 : i32
    %c0_i32_0 = arith.constant 0 : i32
    return %arg0, %c0_i32 : i32, i32
  }
  func.func @transform_1(%arg0: i32) -> (i32, i32) {
    %c0_i32 = arith.constant 0 : i32
    %c0_i32_0 = arith.constant 0 : i32
    %c0_i32_1 = arith.constant 0 : i32
    return %c0_i32, %c0_i32_0 : i32, i32
  }
  func.func @transform_2(%arg0: i32) -> (i32, i32) {
    %c0_i32 = arith.constant 0 : i32
    %c0_i32_0 = arith.constant 0 : i32
    %c0_i32_1 = arith.constant 0 : i32
    return %c0_i32, %c0_i32_0 : i32, i32
  }
  func.func @transform_3(%arg0: i32) -> (i32, i32) {
    %c0_i32 = arith.constant 0 : i32
    %c0_i32_0 = arith.constant 0 : i32
    %c0_i32_1 = arith.constant 0 : i32
    return %c0_i32, %c0_i32_0 : i32, i32
  }
  func.func @transform_4(%arg0: i32) -> (i32, i32) {
    %c0_i32 = arith.constant 0 : i32
    %c0_i32_0 = arith.constant 0 : i32
    %c0_i32_1 = arith.constant 0 : i32
    return %c0_i32, %c0_i32_0 : i32, i32
  }
  func.func @transform_5(%arg0: i32) -> (i32, i32) {
    %c0_i32 = arith.constant 0 : i32
    %c0_i32_0 = arith.constant 0 : i32
    %c0_i32_1 = arith.constant 0 : i32
    return %c0_i32, %c0_i32_0 : i32, i32
  }
  func.func @transform_6(%arg0: i32) -> (i32, i32) {
    %c0_i32 = arith.constant 0 : i32
    %c0_i32_0 = arith.constant 0 : i32
    return %arg0, %c0_i32 : i32, i32
  }
}

</mosaic_0001>

<llo_original>
// kernel: tpu_custom_call.1
$region0: #{tpu_custom_call.1}
  #allocation0 [shape = 'u32[]', space=smem, size = 0x4, offset = 0x4, fixed_abs, tag = 'smem constant byte address 0x4 - core index']
  #allocation1 [shape = 'u32[144,128]{1,0:T(1,128)}', space=vmem, size = 0x12000, scoped, tag = 'internal scratch']
  %s0 = inlined_call_operand.vmem [shape: f32[2,33], index: 0, kind: input, shape index: {}]
  %s1 = inlined_call_operand.vmem [shape: f32[33,512], index: 1, kind: input, shape index: {}]
  %s2 = inlined_call_operand.vmem [shape: f32[512,80], index: 2, kind: input, shape index: {}]
  %s3 = inlined_call_operand.vmem [shape: f32[1,80], index: 3, kind: input, shape index: {}]
  %s4 = inlined_call_operand.vmem [shape: f32[80,64], index: 4, kind: input, shape index: {}]
  %s5 = inlined_call_operand.vmem [shape: f32[64,4], index: 5, kind: input, shape index: {}]
  %s6 = inlined_call_operand.hbm [shape: f32[2,4], index: 6, kind: output, shape index: {}]
  %s7 = sld [smem:[#allocation0]]
  $region34: #{tpu_custom_call.1} parent=0
    _
  %s9 = ssub.s32 1, %s7
  %s10 = scalar_select 0, %s9, %s7
  $region1: #{tpu_custom_call.1} parent=0
    #allocation2 [shape = 'u8[1024]{0}', space=vmem, size = 0x400, scoped, tag = 'output window, operand 0, single buffered']
    #allocation3 [shape = 's32[1]{0}', space=sflag, size = 0x4, scoped, tag = 'scoped memory for tpu_custom_call.1']
    %11 = vsyncpa [#allocation3], 0
    // Predicated region
    $region2: #{tpu_custom_call.1} parent=1 // pred_check
      _
    $region3: #{tpu_custom_call.1} parent=1 // pred_check_branch
      %13 = sbr.rel (0) target = $region5
    $region4: #{tpu_custom_call.1} parent=1 // pred_region
      _
    $region5: #{tpu_custom_call.1} parent=1 // pred_fallthru
      _
    // Predicated region
    $region6: #{tpu_custom_call.1} parent=1 // pred_check
      _
    $region7: #{tpu_custom_call.1} parent=1 // pred_check_branch
      %15 = sbr.rel (0) target = $region9
    $region8: #{tpu_custom_call.1} parent=1 // pred_region
      _
    $region9: #{tpu_custom_call.1} parent=1 // pred_fallthru
      _
    // Predicated region
    $region10: #{tpu_custom_call.1} parent=1 // pred_check
      _
    $region11: #{tpu_custom_call.1} parent=1 // pred_check_branch
      %17 = sbr.rel (0) target = $region13
    $region12: #{tpu_custom_call.1} parent=1 // pred_region
      _
    $region13: #{tpu_custom_call.1} parent=1 // pred_fallthru
      _
    // Predicated region
    $region14: #{tpu_custom_call.1} parent=1 // pred_check
      _
    $region15: #{tpu_custom_call.1} parent=1 // pred_check_branch
      %19 = sbr.rel (0) target = $region17
    $region16: #{tpu_custom_call.1} parent=1 // pred_region
      _
    $region17: #{tpu_custom_call.1} parent=1 // pred_fallthru
      _
    // Predicated region
    $region18: #{tpu_custom_call.1} parent=1 // pred_check
      _
    $region19: #{tpu_custom_call.1} parent=1 // pred_check_branch
      %21 = sbr.rel (0) target = $region21
    $region20: #{tpu_custom_call.1} parent=1 // pred_region
      _
    $region21: #{tpu_custom_call.1} parent=1 // pred_fallthru
      _
    // Predicated region
    $region22: #{tpu_custom_call.1} parent=1 // pred_check
      _
    $region23: #{tpu_custom_call.1} parent=1 // pred_check_branch
      %23 = sbr.rel (0) target = $region25
    $region24: #{tpu_custom_call.1} parent=1 // pred_region
      _
    $region25: #{tpu_custom_call.1} parent=1 // pred_fallthru
      _
    %v24 = vld [vmem:[%s0] sm:$0x3]
    %v25 = vld [vmem:[%s1] sm:$0xff]
    %v26 = vld [vmem:[%s1 + $0x8] sm:$0xff]
    %v27 = vld [vmem:[%s1 + $0x10] sm:$0xff]
    %v28 = vld [vmem:[%s1 + $0x18] sm:$0xff]
    %v29 = vld [vmem:[%s1 + $0x20] sm:$0xff]
    %v30 = vld [vmem:[%s1 + $0x28] sm:$0xff]
    %v31 = vld [vmem:[%s1 + $0x30] sm:$0xff]
    %v32 = vld [vmem:[%s1 + $0x38] sm:$0xff]
    %v33 = vld [vmem:[%s1 + $0x40] sm:$0xff]
    %v34 = vld [vmem:[%s1 + $0x48] sm:$0xff]
    %v35 = vld [vmem:[%s1 + $0x50] sm:$0xff]
    %v36 = vld [vmem:[%s1 + $0x58] sm:$0xff]
    %v37 = vld [vmem:[%s1 + $0x60] sm:$0xff]
    %v38 = vld [vmem:[%s1 + $0x68] sm:$0xff]
    %v39 = vld [vmem:[%s1 + $0x70] sm:$0xff]
    %v40 = vld [vmem:[%s1 + $0x78] sm:$0xff]
    %v41 = vld [vmem:[%s1 + $0x80] sm:$0x1]
    %v42 = vld [vmem:[%s1 + $0x88] sm:$0x1]
    %v43 = vld [vmem:[%s1 + $0x90] sm:$0x1]
    %v44 = vld [vmem:[%s1 + $0x98] sm:$0x1]
    %vm45 = vcmask 269312
    %v47 = vsel %vm45, %v24, 0
    %vm49 = vcmask 1040384
    %v51 = vsel %vm49, %v41, 0
    %v54 = vsel %vm49, %v42, 0
    %v57 = vsel %vm49, %v43, 0
    %v60 = vsel %vm49, %v44, 0
    %62 = vmatprep.subr.mxu0 %v26
    %63 = vmatpush1.msra.mxu0 %v25
    %64 = vmatprep.subr.mxu0 %v30
    %65 = vmatpush1.msra.mxu0 %v29
    %66 = vmatprep.subr.mxu0 %v34
    %67 = vmatpush1.msra.mxu0 %v33
    %68 = vmatprep.subr.mxu0 %v38
    %69 = vmatpush1.msra.mxu0 %v37
    %70 = vmatprep.subr.mxu0 %v54
    %71 = vmatpush1.msra.mxu0 %v51
    %72 = vmatprep.subr.mxu0 0.0
    %73 = vmatpush1.msra.mxu0 0.0
    %74 = vmatprep.subr.mxu0 0.0
    %75 = vmatpush1.msra.mxu0 0.0
    %76 = vmatprep.subr.mxu0 0.0
    %77 = vmatpush1.msra.mxu0 0.0
    %78 = vmatprep.subr.mxu0 0.0
    %79 = vmatpush1.msra.mxu0 0.0
    %80 = vmatprep.subr.mxu0 0.0
    %81 = vmatpush1.msra.mxu0 0.0
    %82 = vmatprep.subr.mxu0 0.0
    %83 = vmatpush1.msra.mxu0 0.0
    %84 = vmatprep.subr.mxu0 0.0
    %85 = vmatpush1.msra.mxu0 0.0
    %86 = vmatprep.subr.mxu0 0.0
    %87 = vmatpush1.msra.mxu0 0.0
    %88 = vmatprep.subr.mxu0 0.0
    %89 = vmatpush1.msra.mxu0 0.0
    %90 = vmatprep.subr.mxu0 0.0
    %91 = vmatpush1.msra.mxu0 0.0
    %92 = vmatprep.subr.mxu0 0.0
    %93 = vmatpush1.msra.mxu0 0.0
    %94 = vmatprep.subr.mxu0 0.0
    %95 = vmatpush1.msra.mxu0 0.0
    %96 = vmatprep.subr.mxu0 0.0
    %97 = vmatpush1.msra.mxu0 0.0
    %98 = vmatprep.subr.mxu0 0.0
    %99 = vmatpush1.msra.mxu0 0.0
    %100 = vmatprep.subr.mxu0 0.0
    %101 = vmatpush1.msra.mxu0 0.0
    %102 = vmatprep.subr.mxu0 0.0
    %103 = vmatpush1.msra.mxu0 0.0
    %104 = vmatprep.subr.mxu0 0.0
    %105 = vmatpush1.msra.mxu0 0.0
    %106 = vmatprep.subr.mxu0 0.0
    %107 = vmatpush1.msra.mxu0 0.0
    %108 = vmatprep.subr.mxu0 0.0
    %109 = vmatpush1.msra.mxu0 0.0
    %110 = vmatprep.subr.mxu0 0.0
    %111 = vmatpush1.msra.mxu0 0.0
    %112 = vmatprep.subr.mxu0 0.0
    %113 = vmatpush1.msra.mxu0 0.0
    %114 = vmatprep.subr.mxu0 0.0
    %115 = vmatpush1.msra.mxu0 0.0
    %116 = vmatprep.subr.mxu0 0.0
    %117 = vmatpush1.msra.mxu0 0.0
    %118 = vmatprep.subr.mxu0 0.0
    %119 = vmatpush1.msra.mxu0 0.0
    %120 = vmatprep.subr.mxu0 0.0
    %121 = vmatpush1.msra.mxu0 0.0
    %122 = vmatprep.subr.mxu0 0.0
    %123 = vmatpush1.msra.mxu0 0.0
    %124 = vmatprep.subr.mxu0 0.0
    %125 = vmatpush1.msra.mxu0 0.0
    %126 = vmatprep.mubr.f32.mxu0 0.0
    %127 = vmatmul.mubr.f32.gmra.mrb[0].mxu0 %v47
    %v128 = vpop.f32.mrb[0].mxu0
    %v129 = vadd.f32 0.0, %v128
    %v130 = vpop.f32.mrb[0].mxu0
    %v131 = vadd.f32 0.0, %v130
    %132 = vdwg.mxu0
    %133 = vmatprep.subr.mxu0 %v28
    %134 = vmatpush1.msra.mxu0 %v27
    %135 = vmatprep.subr.mxu0 %v32
    %136 = vmatpush1.msra.mxu0 %v31
    %137 = vmatprep.subr.mxu0 %v36
    %138 = vmatpush1.msra.mxu0 %v35
    %139 = vmatprep.subr.mxu0 %v40
    %140 = vmatpush1.msra.mxu0 %v39
    %141 = vmatprep.subr.mxu0 %v60
    %142 = vmatpush1.msra.mxu0 %v57
    %143 = vmatprep.subr.mxu0 0.0
    %144 = vmatpush1.msra.mxu0 0.0
    %145 = vmatprep.subr.mxu0 0.0
    %146 = vmatpush1.msra.mxu0 0.0
    %147 = vmatprep.subr.mxu0 0.0
    %148 = vmatpush1.msra.mxu0 0.0
    %149 = vmatprep.subr.mxu0 0.0
    %150 = vmatpush1.msra.mxu0 0.0
    %151 = vmatprep.subr.mxu0 0.0
    %152 = vmatpush1.msra.mxu0 0.0
    %153 = vmatprep.subr.mxu0 0.0
    %154 = vmatpush1.msra.mxu0 0.0
    %155 = vmatprep.subr.mxu0 0.0
    %156 = vmatpush1.msra.mxu0 0.0
    %157 = vmatprep.subr.mxu0 0.0
    %158 = vmatpush1.msra.mxu0 0.0
    %159 = vmatprep.subr.mxu0 0.0
    %160 = vmatpush1.msra.mxu0 0.0
    %161 = vmatprep.subr.mxu0 0.0
    %162 = vmatpush1.msra.mxu0 0.0
    %163 = vmatprep.subr.mxu0 0.0
    %164 = vmatpush1.msra.mxu0 0.0
    %165 = vmatprep.subr.mxu0 0.0
    %166 = vmatpush1.msra.mxu0 0.0
    %167 = vmatprep.subr.mxu0 0.0
    %168 = vmatpush1.msra.mxu0 0.0
    %169 = vmatprep.subr.mxu0 0.0
    %170 = vmatpush1.msra.mxu0 0.0
    %171 = vmatprep.subr.mxu0 0.0
    %172 = vmatpush1.msra.mxu0 0.0
    %173 = vmatprep.subr.mxu0 0.0
    %174 = vmatpush1.msra.mxu0 0.0
    %175 = vmatprep.subr.mxu0 0.0
    %176 = vmatpush1.msra.mxu0 0.0
    %177 = vmatprep.subr.mxu0 0.0
    %178 = vmatpush1.msra.mxu0 0.0
    %179 = vmatprep.subr.mxu0 0.0
    %180 = vmatpush1.msra.mxu0 0.0
    %181 = vmatprep.subr.mxu0 0.0
    %182 = vmatpush1.msra.mxu0 0.0
    %183 = vmatprep.subr.mxu0 0.0
    %184 = vmatpush1.msra.mxu0 0.0
    %185 = vmatprep.subr.mxu0 0.0
    %186 = vmatpush1.msra.mxu0 0.0
    %187 = vmatprep.subr.mxu0 0.0
    %188 = vmatpush1.msra.mxu0 0.0
    %189 = vmatprep.subr.mxu0 0.0
    %190 = vmatpush1.msra.mxu0 0.0
    %191 = vmatprep.subr.mxu0 0.0
    %192 = vmatpush1.msra.mxu0 0.0
    %193 = vmatprep.subr.mxu0 0.0
    %194 = vmatpush1.msra.mxu0 0.0
    %195 = vmatprep.subr.mxu0 0.0
    %196 = vmatpush1.msra.mxu0 0.0
    %197 = vmatprep.mubr.f32.mxu0 0.0
    %198 = vmatmul.mubr.f32.gmra.mrb[0].mxu0 %v47
    %v199 = vpop.f32.mrb[0].mxu0
    %v200 = vadd.f32 0.0, %v199
    %v201 = vpop.f32.mrb[0].mxu0
    %v202 = vadd.f32 0.0, %v201
    %203 = vdwg.mxu0
    %v204 = vmax.f32 %v129, 0.0
    %v205 = vmax.f32 %v131, 0.0
    %v206 = vmax.f32 %v200, 0.0
    %v207 = vmax.f32 %v202, 0.0
    %v208 = vld [vmem:[%s2] sm:$0xff]
    %v209 = vld [vmem:[%s2 + $0x8] sm:$0xff]
    %v210 = vld [vmem:[%s2 + $0x10] sm:$0xff]
    %v211 = vld [vmem:[%s2 + $0x18] sm:$0xff]
    %v212 = vld [vmem:[%s2 + $0x20] sm:$0xff]
    %v213 = vld [vmem:[%s2 + $0x28] sm:$0xff]
    %v214 = vld [vmem:[%s2 + $0x30] sm:$0xff]
    %v215 = vld [vmem:[%s2 + $0x38] sm:$0xff]
    %v216 = vld [vmem:[%s2 + $0x40] sm:$0xff]
    %v217 = vld [vmem:[%s2 + $0x48] sm:$0xff]
    %v218 = vld [vmem:[%s2 + $0x50] sm:$0xff]
    %v219 = vld [vmem:[%s2 + $0x58] sm:$0xff]
    %v220 = vld [vmem:[%s2 + $0x60] sm:$0xff]
    %v221 = vld [vmem:[%s2 + $0x68] sm:$0xff]
    %v222 = vld [vmem:[%s2 + $0x70] sm:$0xff]
    %v223 = vld [vmem:[%s2 + $0x78] sm:$0xff]
    %v224 = vld [vmem:[%s2 + $0x80] sm:$0xff]
    %v225 = vld [vmem:[%s2 + $0x88] sm:$0xff]
    %v226 = vld [vmem:[%s2 + $0x90] sm:$0xff]
    %v227 = vld [vmem:[%s2 + $0x98] sm:$0xff]
    %v228 = vld [vmem:[%s2 + $0xa0] sm:$0xff]
    %v229 = vld [vmem:[%s2 + $0xa8] sm:$0xff]
    %v230 = vld [vmem:[%s2 + $0xb0] sm:$0xff]
    %v231 = vld [vmem:[%s2 + $0xb8] sm:$0xff]
    %v232 = vld [vmem:[%s2 + $0xc0] sm:$0xff]
    %v233 = vld [vmem:[%s2 + $0xc8] sm:$0xff]
    %v234 = vld [vmem:[%s2 + $0xd0] sm:$0xff]
    %v235 = vld [vmem:[%s2 + $0xd8] sm:$0xff]
    %v236 = vld [vmem:[%s2 + $0xe0] sm:$0xff]
    %v237 = vld [vmem:[%s2 + $0xe8] sm:$0xff]
    %v238 = vld [vmem:[%s2 + $0xf0] sm:$0xff]
    %v239 = vld [vmem:[%s2 + $0xf8] sm:$0xff]
    %v240 = vld [vmem:[%s2 + $0x100] sm:$0xff]
    %v241 = vld [vmem:[%s2 + $0x108] sm:$0xff]
    %v242 = vld [vmem:[%s2 + $0x110] sm:$0xff]
    %v243 = vld [vmem:[%s2 + $0x118] sm:$0xff]
    %v244 = vld [vmem:[%s2 + $0x120] sm:$0xff]
    %v245 = vld [vmem:[%s2 + $0x128] sm:$0xff]
    %v246 = vld [vmem:[%s2 + $0x130] sm:$0xff]
    %v247 = vld [vmem:[%s2 + $0x138] sm:$0xff]
    %v248 = vld [vmem:[%s2 + $0x140] sm:$0xff]
    %v249 = vld [vmem:[%s2 + $0x148] sm:$0xff]
    %v250 = vld [vmem:[%s2 + $0x150] sm:$0xff]
    %v251 = vld [vmem:[%s2 + $0x158] sm:$0xff]
    %v252 = vld [vmem:[%s2 + $0x160] sm:$0xff]
    %v253 = vld [vmem:[%s2 + $0x168] sm:$0xff]
    %v254 = vld [vmem:[%s2 + $0x170] sm:$0xff]
    %v255 = vld [vmem:[%s2 + $0x178] sm:$0xff]
    %v256 = vld [vmem:[%s2 + $0x180] sm:$0xff]
    %v257 = vld [vmem:[%s2 + $0x188] sm:$0xff]
    %v258 = vld [vmem:[%s2 + $0x190] sm:$0xff]
    %v259 = vld [vmem:[%s2 + $0x198] sm:$0xff]
    %v260 = vld [vmem:[%s2 + $0x1a0] sm:$0xff]
    %v261 = vld [vmem:[%s2 + $0x1a8] sm:$0xff]
    %v262 = vld [vmem:[%s2 + $0x1b0] sm:$0xff]
    %v263 = vld [vmem:[%s2 + $0x1b8] sm:$0xff]
    %v264 = vld [vmem:[%s2 + $0x1c0] sm:$0xff]
    %v265 = vld [vmem:[%s2 + $0x1c8] sm:$0xff]
    %v266 = vld [vmem:[%s2 + $0x1d0] sm:$0xff]
    %v267 = vld [vmem:[%s2 + $0x1d8] sm:$0xff]
    %v268 = vld [vmem:[%s2 + $0x1e0] sm:$0xff]
    %v269 = vld [vmem:[%s2 + $0x1e8] sm:$0xff]
    %v270 = vld [vmem:[%s2 + $0x1f0] sm:$0xff]
    %v271 = vld [vmem:[%s2 + $0x1f8] sm:$0xff]
    %v272 = vld [vmem:[%s3] sm:$0x1]
    %v274 = vlaneseq
    %v275 = vshrl.u32 %v274, 7
    %v276 = vsub.s32 0, %v275
    %v277 = vrot.slane %v272, %v276
    %279 = vmatprep.subr.mxu0 0.0
    %280 = vmatpush1.msra.mxu0 %v208
    %281 = vmatprep.subr.mxu0 0.0
    %282 = vmatpush1.msra.mxu0 %v209
    %283 = vmatprep.subr.mxu0 0.0
    %284 = vmatpush1.msra.mxu0 %v210
    %285 = vmatprep.subr.mxu0 0.0
    %286 = vmatpush1.msra.mxu0 %v211
    %287 = vmatprep.subr.mxu0 0.0
    %288 = vmatpush1.msra.mxu0 %v212
    %289 = vmatprep.subr.mxu0 0.0
    %290 = vmatpush1.msra.mxu0 %v213
    %291 = vmatprep.subr.mxu0 0.0
    %292 = vmatpush1.msra.mxu0 %v214
    %293 = vmatprep.subr.mxu0 0.0
    %294 = vmatpush1.msra.mxu0 %v215
    %295 = vmatprep.subr.mxu0 0.0
    %296 = vmatpush1.msra.mxu0 %v216
    %297 = vmatprep.subr.mxu0 0.0
    %298 = vmatpush1.msra.mxu0 %v217
    %299 = vmatprep.subr.mxu0 0.0
    %300 = vmatpush1.msra.mxu0 %v218
    %301 = vmatprep.subr.mxu0 0.0
    %302 = vmatpush1.msra.mxu0 %v219
    %303 = vmatprep.subr.mxu0 0.0
    %304 = vmatpush1.msra.mxu0 %v220
    %305 = vmatprep.subr.mxu0 0.0
    %306 = vmatpush1.msra.mxu0 %v221
    %307 = vmatprep.subr.mxu0 0.0
    %308 = vmatpush1.msra.mxu0 %v222
    %309 = vmatprep.subr.mxu0 0.0
    %310 = vmatpush1.msra.mxu0 %v223
    %311 = vmatprep.subr.mxu0 0.0
    %312 = vmatpush1.msra.mxu0 %v224
    %313 = vmatprep.subr.mxu0 0.0
    %314 = vmatpush1.msra.mxu0 %v225
    %315 = vmatprep.subr.mxu0 0.0
    %316 = vmatpush1.msra.mxu0 %v226
    %317 = vmatprep.subr.mxu0 0.0
    %318 = vmatpush1.msra.mxu0 %v227
    %319 = vmatprep.subr.mxu0 0.0
    %320 = vmatpush1.msra.mxu0 %v228
    %321 = vmatprep.subr.mxu0 0.0
    %322 = vmatpush1.msra.mxu0 %v229
    %323 = vmatprep.subr.mxu0 0.0
    %324 = vmatpush1.msra.mxu0 %v230
    %325 = vmatprep.subr.mxu0 0.0
    %326 = vmatpush1.msra.mxu0 %v231
    %327 = vmatprep.subr.mxu0 0.0
    %328 = vmatpush1.msra.mxu0 %v232
    %329 = vmatprep.subr.mxu0 0.0
    %330 = vmatpush1.msra.mxu0 %v233
    %331 = vmatprep.subr.mxu0 0.0
    %332 = vmatpush1.msra.mxu0 %v234
    %333 = vmatprep.subr.mxu0 0.0
    %334 = vmatpush1.msra.mxu0 %v235
    %335 = vmatprep.subr.mxu0 0.0
    %336 = vmatpush1.msra.mxu0 %v236
    %337 = vmatprep.subr.mxu0 0.0
    %338 = vmatpush1.msra.mxu0 %v237
    %339 = vmatprep.subr.mxu0 0.0
    %340 = vmatpush1.msra.mxu0 %v238
    %341 = vmatprep.subr.mxu0 0.0
    %342 = vmatpush1.msra.mxu0 %v239
    %343 = vmatprep.mubr.f32.mxu0 %v205
    %344 = vmatmul.mubr.f32.gmra.mrb[0].mxu0 %v204
    %v345 = vpop.f32.mrb[0].mxu0
    %v346 = vadd.f32 %v277, %v345
    %v347 = vpop.f32.mrb[0].mxu0
    %348 = vdwg.mxu0
    %349 = vmatprep.subr.mxu0 0.0
    %350 = vmatpush1.msra.mxu0 %v240
    %351 = vmatprep.subr.mxu0 0.0
    %352 = vmatpush1.msra.mxu0 %v241
    %353 = vmatprep.subr.mxu0 0.0
    %354 = vmatpush1.msra.mxu0 %v242
    %355 = vmatprep.subr.mxu0 0.0
    %356 = vmatpush1.msra.mxu0 %v243
    %357 = vmatprep.subr.mxu0 0.0
    %358 = vmatpush1.msra.mxu0 %v244
    %359 = vmatprep.subr.mxu0 0.0
    %360 = vmatpush1.msra.mxu0 %v245
    %361 = vmatprep.subr.mxu0 0.0
    %362 = vmatpush1.msra.mxu0 %v246
    %363 = vmatprep.subr.mxu0 0.0
    %364 = vmatpush1.msra.mxu0 %v247
    %365 = vmatprep.subr.mxu0 0.0
    %366 = vmatpush1.msra.mxu0 %v248
    %367 = vmatprep.subr.mxu0 0.0
    %368 = vmatpush1.msra.mxu0 %v249
    %369 = vmatprep.subr.mxu0 0.0
    %370 = vmatpush1.msra.mxu0 %v250
    %371 = vmatprep.subr.mxu0 0.0
    %372 = vmatpush1.msra.mxu0 %v251
    %373 = vmatprep.subr.mxu0 0.0
    %374 = vmatpush1.msra.mxu0 %v252
    %375 = vmatprep.subr.mxu0 0.0
    %376 = vmatpush1.msra.mxu0 %v253
    %377 = vmatprep.subr.mxu0 0.0
    %378 = vmatpush1.msra.mxu0 %v254
    %379 = vmatprep.subr.mxu0 0.0
    %380 = vmatpush1.msra.mxu0 %v255
    %381 = vmatprep.subr.mxu0 0.0
    %382 = vmatpush1.msra.mxu0 %v256
    %383 = vmatprep.subr.mxu0 0.0
    %384 = vmatpush1.msra.mxu0 %v257
    %385 = vmatprep.subr.mxu0 0.0
    %386 = vmatpush1.msra.mxu0 %v258
    %387 = vmatprep.subr.mxu0 0.0
    %388 = vmatpush1.msra.mxu0 %v259
    %389 = vmatprep.subr.mxu0 0.0
    %390 = vmatpush1.msra.mxu0 %v260
    %391 = vmatprep.subr.mxu0 0.0
    %392 = vmatpush1.msra.mxu0 %v261
    %393 = vmatprep.subr.mxu0 0.0
    %394 = vmatpush1.msra.mxu0 %v262
    %395 = vmatprep.subr.mxu0 0.0
    %396 = vmatpush1.msra.mxu0 %v263
    %397 = vmatprep.subr.mxu0 0.0
    %398 = vmatpush1.msra.mxu0 %v264
    %399 = vmatprep.subr.mxu0 0.0
    %400 = vmatpush1.msra.mxu0 %v265
    %401 = vmatprep.subr.mxu0 0.0
    %402 = vmatpush1.msra.mxu0 %v266
    %403 = vmatprep.subr.mxu0 0.0
    %404 = vmatpush1.msra.mxu0 %v267
    %405 = vmatprep.subr.mxu0 0.0
    %406 = vmatpush1.msra.mxu0 %v268
    %407 = vmatprep.subr.mxu0 0.0
    %408 = vmatpush1.msra.mxu0 %v269
    %409 = vmatprep.subr.mxu0 0.0
    %410 = vmatpush1.msra.mxu0 %v270
    %411 = vmatprep.subr.mxu0 0.0
    %412 = vmatpush1.msra.mxu0 %v271
    %413 = vmatprep.mubr.f32.mxu0 %v207
    %414 = vmatmul.mubr.f32.gmra.mrb[0].mxu0 %v206
    %v415 = vpop.f32.mrb[0].mxu0
    %v416 = vadd.f32 %v346, %v415
    %v417 = vpop.f32.mrb[0].mxu0
    %418 = vdwg.mxu0
    %v419 = vmax.f32 %v416, 0.0
    %v420 = vld [vmem:[%s4] sm:$0xff]
    %v421 = vld [vmem:[%s4 + $0x8] sm:$0xff]
    %v422 = vld [vmem:[%s4 + $0x10] sm:$0xff]
    %v423 = vld [vmem:[%s4 + $0x18] sm:$0xff]
    %v424 = vld [vmem:[%s4 + $0x20] sm:$0xff]
    %v425 = vld [vmem:[%s4 + $0x28] sm:$0xff]
    %v426 = vld [vmem:[%s4 + $0x30] sm:$0xff]
    %v427 = vld [vmem:[%s4 + $0x38] sm:$0xff]
    %v428 = vld [vmem:[%s4 + $0x40] sm:$0xff]
    %v429 = vld [vmem:[%s4 + $0x48] sm:$0xff]
    %vm430 = vcmask 654336
    %v432 = vsel %vm430, %v419, 0
    %434 = vmatprep.subr.mxu0 0.0
    %435 = vmatpush1.msra.mxu0 %v420
    %436 = vmatprep.subr.mxu0 0.0
    %437 = vmatpush1.msra.mxu0 %v421
    %438 = vmatprep.subr.mxu0 0.0
    %439 = vmatpush1.msra.mxu0 %v422
    %440 = vmatprep.subr.mxu0 0.0
    %441 = vmatpush1.msra.mxu0 %v423
    %442 = vmatprep.subr.mxu0 0.0
    %443 = vmatpush1.msra.mxu0 %v424
    %444 = vmatprep.subr.mxu0 0.0
    %445 = vmatpush1.msra.mxu0 %v425
    %446 = vmatprep.subr.mxu0 0.0
    %447 = vmatpush1.msra.mxu0 %v426
    %448 = vmatprep.subr.mxu0 0.0
    %449 = vmatpush1.msra.mxu0 %v427
    %450 = vmatprep.subr.mxu0 0.0
    %451 = vmatpush1.msra.mxu0 %v428
    %452 = vmatprep.subr.mxu0 0.0
    %453 = vmatpush1.msra.mxu0 %v429
    %454 = vmatprep.subr.mxu0 0.0
    %455 = vmatpush1.msra.mxu0 0.0
    %456 = vmatprep.subr.mxu0 0.0
    %457 = vmatpush1.msra.mxu0 0.0
    %458 = vmatprep.subr.mxu0 0.0
    %459 = vmatpush1.msra.mxu0 0.0
    %460 = vmatprep.subr.mxu0 0.0
    %461 = vmatpush1.msra.mxu0 0.0
    %462 = vmatprep.subr.mxu0 0.0
    %463 = vmatpush1.msra.mxu0 0.0
    %464 = vmatprep.subr.mxu0 0.0
    %465 = vmatpush1.msra.mxu0 0.0
    %466 = vmatprep.subr.mxu0 0.0
    %467 = vmatpush1.msra.mxu0 0.0
    %468 = vmatprep.subr.mxu0 0.0
    %469 = vmatpush1.msra.mxu0 0.0
    %470 = vmatprep.subr.mxu0 0.0
    %471 = vmatpush1.msra.mxu0 0.0
    %472 = vmatprep.subr.mxu0 0.0
    %473 = vmatpush1.msra.mxu0 0.0
    %474 = vmatprep.subr.mxu0 0.0
    %475 = vmatpush1.msra.mxu0 0.0
    %476 = vmatprep.subr.mxu0 0.0
    %477 = vmatpush1.msra.mxu0 0.0
    %478 = vmatprep.subr.mxu0 0.0
    %479 = vmatpush1.msra.mxu0 0.0
    %480 = vmatprep.subr.mxu0 0.0
    %481 = vmatpush1.msra.mxu0 0.0
    %482 = vmatprep.subr.mxu0 0.0
    %483 = vmatpush1.msra.mxu0 0.0
    %484 = vmatprep.subr.mxu0 0.0
    %485 = vmatpush1.msra.mxu0 0.0
    %486 = vmatprep.subr.mxu0 0.0
    %487 = vmatpush1.msra.mxu0 0.0
    %488 = vmatprep.subr.mxu0 0.0
    %489 = vmatpush1.msra.mxu0 0.0
    %490 = vmatprep.subr.mxu0 0.0
    %491 = vmatpush1.msra.mxu0 0.0
    %492 = vmatprep.subr.mxu0 0.0
    %493 = vmatpush1.msra.mxu0 0.0
    %494 = vmatprep.subr.mxu0 0.0
    %495 = vmatpush1.msra.mxu0 0.0
    %496 = vmatprep.subr.mxu0 0.0
    %497 = vmatpush1.msra.mxu0 0.0
    %498 = vmatprep.mubr.f32.mxu0 0.0
    %499 = vmatmul.mubr.f32.gmra.mrb[0].mxu0 %v432
    %v500 = vpop.f32.mrb[0].mxu0
    %v501 = vadd.f32 0.0, %v500
    %v502 = vpop.f32.mrb[0].mxu0
    %503 = vdwg.mxu0
    %v504 = vmul.f32 %v501, %v501
    %v505 = vld [vmem:[%s5] sm:$0xff]
    %v506 = vld [vmem:[%s5 + $0x8] sm:$0xff]
    %v507 = vld [vmem:[%s5 + $0x10] sm:$0xff]
    %v508 = vld [vmem:[%s5 + $0x18] sm:$0xff]
    %v509 = vld [vmem:[%s5 + $0x20] sm:$0xff]
    %v510 = vld [vmem:[%s5 + $0x28] sm:$0xff]
    %v511 = vld [vmem:[%s5 + $0x30] sm:$0xff]
    %v512 = vld [vmem:[%s5 + $0x38] sm:$0xff]
    %vm513 = vcmask 523264
    %v515 = vsel %vm513, %v504, 0
    %517 = vmatprep.subr.mxu0 0.0
    %518 = vmatpush1.msra.mxu0 %v505
    %519 = vmatprep.subr.mxu0 0.0
    %520 = vmatpush1.msra.mxu0 %v506
    %521 = vmatprep.subr.mxu0 0.0
    %522 = vmatpush1.msra.mxu0 %v507
    %523 = vmatprep.subr.mxu0 0.0
    %524 = vmatpush1.msra.mxu0 %v508
    %525 = vmatprep.subr.mxu0 0.0
    %526 = vmatpush1.msra.mxu0 %v509
    %527 = vmatprep.subr.mxu0 0.0
    %528 = vmatpush1.msra.mxu0 %v510
    %529 = vmatprep.subr.mxu0 0.0
    %530 = vmatpush1.msra.mxu0 %v511
    %531 = vmatprep.subr.mxu0 0.0
    %532 = vmatpush1.msra.mxu0 %v512
    %533 = vmatprep.subr.mxu0 0.0
    %534 = vmatpush1.msra.mxu0 0.0
    %535 = vmatprep.subr.mxu0 0.0
    %536 = vmatpush1.msra.mxu0 0.0
    %537 = vmatprep.subr.mxu0 0.0
    %538 = vmatpush1.msra.mxu0 0.0
    %539 = vmatprep.subr.mxu0 0.0
    %540 = vmatpush1.msra.mxu0 0.0
    %541 = vmatprep.subr.mxu0 0.0
    %542 = vmatpush1.msra.mxu0 0.0
    %543 = vmatprep.subr.mxu0 0.0
    %544 = vmatpush1.msra.mxu0 0.0
    %545 = vmatprep.subr.mxu0 0.0
    %546 = vmatpush1.msra.mxu0 0.0
    %547 = vmatprep.subr.mxu0 0.0
    %548 = vmatpush1.msra.mxu0 0.0
    %549 = vmatprep.subr.mxu0 0.0
    %550 = vmatpush1.msra.mxu0 0.0
    %551 = vmatprep.subr.mxu0 0.0
    %552 = vmatpush1.msra.mxu0 0.0
    %553 = vmatprep.subr.mxu0 0.0
    %554 = vmatpush1.msra.mxu0 0.0
    %555 = vmatprep.subr.mxu0 0.0
    %556 = vmatpush1.msra.mxu0 0.0
    %557 = vmatprep.subr.mxu0 0.0
    %558 = vmatpush1.msra.mxu0 0.0
    %559 = vmatprep.subr.mxu0 0.0
    %560 = vmatpush1.msra.mxu0 0.0
    %561 = vmatprep.subr.mxu0 0.0
    %562 = vmatpush1.msra.mxu0 0.0
    %563 = vmatprep.subr.mxu0 0.0
    %564 = vmatpush1.msra.mxu0 0.0
    %565 = vmatprep.subr.mxu0 0.0
    %566 = vmatpush1.msra.mxu0 0.0
    %567 = vmatprep.subr.mxu0 0.0
    %568 = vmatpush1.msra.mxu0 0.0
    %569 = vmatprep.subr.mxu0 0.0
    %570 = vmatpush1.msra.mxu0 0.0
    %571 = vmatprep.subr.mxu0 0.0
    %572 = vmatpush1.msra.mxu0 0.0
    %573 = vmatprep.subr.mxu0 0.0
    %574 = vmatpush1.msra.mxu0 0.0
    %575 = vmatprep.subr.mxu0 0.0
    %576 = vmatpush1.msra.mxu0 0.0
    %577 = vmatprep.subr.mxu0 0.0
    %578 = vmatpush1.msra.mxu0 0.0
    %579 = vmatprep.subr.mxu0 0.0
    %580 = vmatpush1.msra.mxu0 0.0
    %581 = vmatprep.mubr.f32.mxu0 0.0
    %582 = vmatmul.mubr.f32.gmra.mrb[0].mxu0 %v515
    %v583 = vpop.f32.mrb[0].mxu0
    %v584 = vadd.f32 1e-14, %v583
    %v585 = vpop.f32.mrb[0].mxu0
    %586 = vdwg.mxu0
    %v587 = vrsqrt.pop %v584
    %v588 = vmul.f32 %v584, %v587
    %vm589 = vcmp.eq.f32.partialorder %v584, inf
    %v590 = vsel %vm589, %v584, %v588
    %vm591 = vcmp.eq.f32.partialorder %v584, 0.0
    %v592 = vand.u32 %v584, 2147483648
    %v593 = vsel %vm591, %v592, %v590
    %vm594 = vcmask 25600
    %595 = vst.msk [vmem:[#allocation2] sm:$0x3] %vm594, %v593
    // Predicated region
    $region26: #{tpu_custom_call.1} parent=1 // pred_check
      _
    $region27: #{tpu_custom_call.1} parent=1 // pred_check_branch
      %597 = sbr.rel (0) target = $region29
    $region28: #{tpu_custom_call.1} parent=1 // pred_region
      %s599 = ssub.s32 32, 32
      %600 = vsyncadd [#allocation3], %s599
      %s602 = sshll.u32 [#allocation2], 4
      %s603 = int_to_ptr.vmem [resolvable:$true] %s602
      %605 = dma.vmem_to_hbm [thread:$0]  %s603, 32, %s6, [#allocation3]
    $region29: #{tpu_custom_call.1} parent=1 // pred_fallthru
      _
    // Predicated region
    $region30: #{tpu_custom_call.1} parent=1 // pred_check
      _
    $region31: #{tpu_custom_call.1} parent=1 // pred_check_branch
      %607 = sbr.rel (0) target = $region33
    $region32: #{tpu_custom_call.1} parent=1 // pred_region
      %608 = dma.done [#allocation3], 32
    $region33: #{tpu_custom_call.1} parent=1 // pred_fallthru
      _
    %609 = vsyncpa [#allocation3], 1

</llo_original>
